<compile_context>
chip_gen: v5e
topology: v5e:2x2
jax: 0.10.0
libtpu: 0.0.40
codegen_flags: <defaults>
</compile_context>

<pallas_src>
from functools import partial

import jax
import jax.numpy as jnp
from jax.experimental import pallas as pl
from jax.experimental.pallas import tpu as pltpu


def _decoder_kernel(seq_len,
                    h0_ref, w_rec_ref, b_rec_ref, wd_t_ref, bd_ref,
                    out_ref, h_hist):
    """Folded recurrence + hoisted output projection (single kernel invocation).

    Refs (all VMEM-resident, full arrays):
      h0     : (B, L)      initial hidden state (h_0[0])
      w_rec  : (L, L)      folded recurrence matrix = W_d^T @ W_ih^T + W_hh^T
      b_rec  : (B, L)      folded bias, pre-broadcast to the batch
      wd_t   : (L, F)      dense_dec1 weight, pre-transposed
      bd     : (1, F)      dense_dec1 bias
      out    : (B*S, F)    batch-major rows: row b*S + t  ==  x_{t+1}[b, :]
      h_hist : (B, S, L)   VMEM scratch holding every hidden state h_t
    """
    w_rec = w_rec_ref[...]
    b_rec = b_rec_ref[...]

    h = h0_ref[...]                                   # (B, L)
    # Fully unrolled recurrence: critical path per step = 1 MXU dot + tanh (EUP).
    for t in range(seq_len):
        h = jnp.tanh(
            jnp.dot(h, w_rec, preferred_element_type=jnp.float32) + b_rec)
        h_hist[:, t, :] = h                           # static sublane offset store

    B, L = h.shape
    # Hoisted output projection: one matmul over all timesteps + one bulk store.
    hist = h_hist[...].reshape(B * seq_len, L)        # layout-trivial reshape
    x_all = (jnp.dot(hist, wd_t_ref[...], preferred_element_type=jnp.float32)
             + bd_ref[...])                           # (B*S, F)
    out_ref[...] = x_all.astype(out_ref.dtype)


def recurrent_decoder_forward(h_0, seq_len, params):
    """JAX wrapper mirroring RecurrentDecoder.forward(h_0, seq_len)."""
    assert h_0.ndim == 3 and h_0.shape[0] == 1, "expect (num_layers=1, B, L)"
    h0 = h_0[0]                                       # (B, L); safe for B == 1
    B, L = h0.shape
    F = params["w_d"].shape[0]

    # Fold dense_dec1 + input projection into the recurrence (computed once).
    w_rec = params["w_d"].T @ params["w_ih"].T + params["w_hh"].T        # (L, L)
    b_rec = params["b_d"] @ params["w_ih"].T + params["b_ih"] + params["b_hh"]
    b_rec = jnp.broadcast_to(b_rec[None, :], (B, L)).astype(jnp.float32)  # (B, L)

    vmem = pl.BlockSpec(memory_space=pltpu.MemorySpace.VMEM)

    out_flat = pl.pallas_call(
        partial(_decoder_kernel, seq_len),
        out_shape=jax.ShapeDtypeStruct((B * seq_len, F), h0.dtype),
        in_specs=[vmem] * 5,
        out_specs=vmem,
        scratch_shapes=[pltpu.VMEM((B, seq_len, L), jnp.float32)],
    )(
        h0,
        w_rec,                               # (L, L)
        b_rec,                               # (B, L)
        params["w_d"].T,                     # (L, F)
        params["b_d"][None, :],              # (1, F)
    )
    # Rows are batch-major -> a free reshape gives the PyTorch (B, S, F) layout.
    return out_flat.reshape(B, seq_len, F)


def _reference_forward(h_0, seq_len, params):
    """Pure-JAX replica of the (unfolded) PyTorch forward, for correctness."""
    h = h_0[0]
    x = h @ params["w_d"].T + params["b_d"]
    outs = []
    for _ in range(seq_len):
        h = jnp.tanh(x @ params["w_ih"].T + params["b_ih"]
                     + h @ params["w_hh"].T + params["b_hh"])
        x = h @ params["w_d"].T + params["b_d"]
        outs.append(x)
    F = params["w_d"].shape[0]
    return jnp.concatenate(outs, axis=1).reshape(-1, seq_len, F)


def init_params(key, latent_dim, n_features):
    """Deterministic synthetic parameters (PyTorch-style uniform init)."""
    ks = jax.random.split(key, 6)
    bound = 1.0 / jnp.sqrt(latent_dim)
    u = lambda k, shape, b: jax.random.uniform(k, shape, jnp.float32, -b, b)
    return {
        "w_ih": u(ks[0], (latent_dim, n_features), bound),   # RNNCell weight_ih
        "b_ih": u(ks[1], (latent_dim,), bound),
        "w_hh": u(ks[2], (latent_dim, latent_dim), bound),   # RNNCell weight_hh
        "b_hh": u(ks[3], (latent_dim,), bound),
        "w_d":  u(ks[4], (n_features, latent_dim), bound),   # dense_dec1 weight
        "b_d":  u(ks[5], (n_features,), bound),
    }


if __name__ == "__main__":
    latent_dim = 32
    n_features = 4
    batch = 2
    seq_len = 8

    key = jax.random.PRNGKey(0)
    k_h, k_p = jax.random.split(key)

    params = init_params(k_p, latent_dim, n_features)
    # h_0 as produced by an encoder RNN: (num_layers=1, batch, latent_dim)
    h_0 = jax.random.normal(k_h, (1, batch, latent_dim), jnp.float32)

    out = recurrent_decoder_forward(h_0, seq_len, params)
    out = jax.block_until_ready(out)

    ref = _reference_forward(h_0, seq_len, params)
    assert out.shape == (batch, seq_len, n_features), out.shape
    # Folded weights reassociate float adds -> allow a slightly looser tolerance.
    assert jnp.allclose(out, ref, atol=1e-4, rtol=1e-4), "mismatch vs reference"

    print("KERNEL_OK")
</pallas_src>

<mosaic_0001>
module attributes {stable_mosaic.version = 11 : i64} {
  func.func @_decoder_kernel(%arg0: memref<2x32xf32, #tpu.memory_space<vmem>>, %arg1: memref<32x32xf32, #tpu.memory_space<vmem>>, %arg2: memref<2x32xf32, #tpu.memory_space<vmem>>, %arg3: memref<32x4xf32, #tpu.memory_space<vmem>>, %arg4: memref<1x4xf32, #tpu.memory_space<vmem>>, %arg5: memref<16x4xf32, #tpu.memory_space<vmem>>, %arg6: memref<2x8x32xf32, #tpu.memory_space<vmem>>) attributes {dimension_semantics = [], scalar_prefetch = 0 : i64, scratch_operands = 1 : i64, tpu.core_type = #tpu.core_type<tc>} {
    %c0 = arith.constant 0 : index
    %c0_0 = arith.constant 0 : index
    %0 = vector.load %arg1[%c0, %c0_0] : memref<32x32xf32, #tpu.memory_space<vmem>>, vector<32x32xf32>
    %c0_1 = arith.constant 0 : index
    %c0_2 = arith.constant 0 : index
    %1 = vector.load %arg2[%c0_1, %c0_2] : memref<2x32xf32, #tpu.memory_space<vmem>>, vector<2x32xf32>
    %c0_3 = arith.constant 0 : index
    %c0_4 = arith.constant 0 : index
    %2 = vector.load %arg0[%c0_3, %c0_4] : memref<2x32xf32, #tpu.memory_space<vmem>>, vector<2x32xf32>
    %cst = arith.constant dense<0.000000e+00> : vector<2x32xf32>
    %3 = tpu.matmul %2, %0, %cst {dimension_numbers = #tpu.dot_dimension_numbers<[1], [0], [0], [1], [0, 0, 1, 1], [], []>} : vector<2x32xf32>, vector<32x32xf32>, vector<2x32xf32> -> vector<2x32xf32>
    %4 = arith.addf %3, %1 : vector<2x32xf32>
    %5 = math.tanh %4 : vector<2x32xf32>
    %c0_5 = arith.constant 0 : index
    %c0_6 = arith.constant 0 : index
    %c0_7 = arith.constant 0 : index
    %6 = vector.load %arg6[%c0_5, %c0_6, %c0_7] : memref<2x8x32xf32, #tpu.memory_space<vmem>>, vector<2x1x32xf32>
    %7 = vector.shape_cast %6 : vector<2x1x32xf32> to vector<2x32xf32>
    %8 = vector.shape_cast %5 : vector<2x32xf32> to vector<2x1x32xf32>
    tpu.vector_store %arg6[%c0_5, %c0_6, %c0_7], %8 {strides = array<i32>} : memref<2x8x32xf32, #tpu.memory_space<vmem>>, vector<2x1x32xf32>,
    %cst_8 = arith.constant dense<0.000000e+00> : vector<2x32xf32>
    %9 = tpu.matmul %5, %0, %cst_8 {dimension_numbers = #tpu.dot_dimension_numbers<[1], [0], [0], [1], [0, 0, 1, 1], [], []>} : vector<2x32xf32>, vector<32x32xf32>, vector<2x32xf32> -> vector<2x32xf32>
    %10 = arith.addf %9, %1 : vector<2x32xf32>
    %11 = math.tanh %10 : vector<2x32xf32>
    %c0_9 = arith.constant 0 : index
    %c1 = arith.constant 1 : index
    %c0_10 = arith.constant 0 : index
    %12 = vector.load %arg6[%c0_9, %c1, %c0_10] : memref<2x8x32xf32, #tpu.memory_space<vmem>>, vector<2x1x32xf32>
    %13 = vector.shape_cast %12 : vector<2x1x32xf32> to vector<2x32xf32>
    %14 = vector.shape_cast %11 : vector<2x32xf32> to vector<2x1x32xf32>
    tpu.vector_store %arg6[%c0_9, %c1, %c0_10], %14 {strides = array<i32>} : memref<2x8x32xf32, #tpu.memory_space<vmem>>, vector<2x1x32xf32>,
    %cst_11 = arith.constant dense<0.000000e+00> : vector<2x32xf32>
    %15 = tpu.matmul %11, %0, %cst_11 {dimension_numbers = #tpu.dot_dimension_numbers<[1], [0], [0], [1], [0, 0, 1, 1], [], []>} : vector<2x32xf32>, vector<32x32xf32>, vector<2x32xf32> -> vector<2x32xf32>
    %16 = arith.addf %15, %1 : vector<2x32xf32>
    %17 = math.tanh %16 : vector<2x32xf32>
    %c0_12 = arith.constant 0 : index
    %c2 = arith.constant 2 : index
    %c0_13 = arith.constant 0 : index
    %18 = vector.load %arg6[%c0_12, %c2, %c0_13] : memref<2x8x32xf32, #tpu.memory_space<vmem>>, vector<2x1x32xf32>
    %19 = vector.shape_cast %18 : vector<2x1x32xf32> to vector<2x32xf32>
    %20 = vector.shape_cast %17 : vector<2x32xf32> to vector<2x1x32xf32>
    tpu.vector_store %arg6[%c0_12, %c2, %c0_13], %20 {strides = array<i32>} : memref<2x8x32xf32, #tpu.memory_space<vmem>>, vector<2x1x32xf32>,
    %cst_14 = arith.constant dense<0.000000e+00> : vector<2x32xf32>
    %21 = tpu.matmul %17, %0, %cst_14 {dimension_numbers = #tpu.dot_dimension_numbers<[1], [0], [0], [1], [0, 0, 1, 1], [], []>} : vector<2x32xf32>, vector<32x32xf32>, vector<2x32xf32> -> vector<2x32xf32>
    %22 = arith.addf %21, %1 : vector<2x32xf32>
    %23 = math.tanh %22 : vector<2x32xf32>
    %c0_15 = arith.constant 0 : index
    %c3 = arith.constant 3 : index
    %c0_16 = arith.constant 0 : index
    %24 = vector.load %arg6[%c0_15, %c3, %c0_16] : memref<2x8x32xf32, #tpu.memory_space<vmem>>, vector<2x1x32xf32>
    %25 = vector.shape_cast %24 : vector<2x1x32xf32> to vector<2x32xf32>
    %26 = vector.shape_cast %23 : vector<2x32xf32> to vector<2x1x32xf32>
    tpu.vector_store %arg6[%c0_15, %c3, %c0_16], %26 {strides = array<i32>} : memref<2x8x32xf32, #tpu.memory_space<vmem>>, vector<2x1x32xf32>,
    %cst_17 = arith.constant dense<0.000000e+00> : vector<2x32xf32>
    %27 = tpu.matmul %23, %0, %cst_17 {dimension_numbers = #tpu.dot_dimension_numbers<[1], [0], [0], [1], [0, 0, 1, 1], [], []>} : vector<2x32xf32>, vector<32x32xf32>, vector<2x32xf32> -> vector<2x32xf32>
    %28 = arith.addf %27, %1 : vector<2x32xf32>
    %29 = math.tanh %28 : vector<2x32xf32>
    %c0_18 = arith.constant 0 : index
    %c4 = arith.constant 4 : index
    %c0_19 = arith.constant 0 : index
    %30 = vector.load %arg6[%c0_18, %c4, %c0_19] : memref<2x8x32xf32, #tpu.memory_space<vmem>>, vector<2x1x32xf32>
    %31 = vector.shape_cast %30 : vector<2x1x32xf32> to vector<2x32xf32>
    %32 = vector.shape_cast %29 : vector<2x32xf32> to vector<2x1x32xf32>
    tpu.vector_store %arg6[%c0_18, %c4, %c0_19], %32 {strides = array<i32>} : memref<2x8x32xf32, #tpu.memory_space<vmem>>, vector<2x1x32xf32>,
    %cst_20 = arith.constant dense<0.000000e+00> : vector<2x32xf32>
    %33 = tpu.matmul %29, %0, %cst_20 {dimension_numbers = #tpu.dot_dimension_numbers<[1], [0], [0], [1], [0, 0, 1, 1], [], []>} : vector<2x32xf32>, vector<32x32xf32>, vector<2x32xf32> -> vector<2x32xf32>
    %34 = arith.addf %33, %1 : vector<2x32xf32>
    %35 = math.tanh %34 : vector<2x32xf32>
    %c0_21 = arith.constant 0 : index
    %c5 = arith.constant 5 : index
    %c0_22 = arith.constant 0 : index
    %36 = vector.load %arg6[%c0_21, %c5, %c0_22] : memref<2x8x32xf32, #tpu.memory_space<vmem>>, vector<2x1x32xf32>
    %37 = vector.shape_cast %36 : vector<2x1x32xf32> to vector<2x32xf32>
    %38 = vector.shape_cast %35 : vector<2x32xf32> to vector<2x1x32xf32>
    tpu.vector_store %arg6[%c0_21, %c5, %c0_22], %38 {strides = array<i32>} : memref<2x8x32xf32, #tpu.memory_space<vmem>>, vector<2x1x32xf32>,
    %cst_23 = arith.constant dense<0.000000e+00> : vector<2x32xf32>
    %39 = tpu.matmul %35, %0, %cst_23 {dimension_numbers = #tpu.dot_dimension_numbers<[1], [0], [0], [1], [0, 0, 1, 1], [], []>} : vector<2x32xf32>, vector<32x32xf32>, vector<2x32xf32> -> vector<2x32xf32>
    %40 = arith.addf %39, %1 : vector<2x32xf32>
    %41 = math.tanh %40 : vector<2x32xf32>
    %c0_24 = arith.constant 0 : index
    %c6 = arith.constant 6 : index
    %c0_25 = arith.constant 0 : index
    %42 = vector.load %arg6[%c0_24, %c6, %c0_25] : memref<2x8x32xf32, #tpu.memory_space<vmem>>, vector<2x1x32xf32>
    %43 = vector.shape_cast %42 : vector<2x1x32xf32> to vector<2x32xf32>
    %44 = vector.shape_cast %41 : vector<2x32xf32> to vector<2x1x32xf32>
    tpu.vector_store %arg6[%c0_24, %c6, %c0_25], %44 {strides = array<i32>} : memref<2x8x32xf32, #tpu.memory_space<vmem>>, vector<2x1x32xf32>,
    %cst_26 = arith.constant dense<0.000000e+00> : vector<2x32xf32>
    %45 = tpu.matmul %41, %0, %cst_26 {dimension_numbers = #tpu.dot_dimension_numbers<[1], [0], [0], [1], [0, 0, 1, 1], [], []>} : vector<2x32xf32>, vector<32x32xf32>, vector<2x32xf32> -> vector<2x32xf32>
    %46 = arith.addf %45, %1 : vector<2x32xf32>
    %47 = math.tanh %46 : vector<2x32xf32>
    %c0_27 = arith.constant 0 : index
    %c7 = arith.constant 7 : index
    %c0_28 = arith.constant 0 : index
    %48 = vector.load %arg6[%c0_27, %c7, %c0_28] : memref<2x8x32xf32, #tpu.memory_space<vmem>>, vector<2x1x32xf32>
    %49 = vector.shape_cast %48 : vector<2x1x32xf32> to vector<2x32xf32>
    %50 = vector.shape_cast %47 : vector<2x32xf32> to vector<2x1x32xf32>
    tpu.vector_store %arg6[%c0_27, %c7, %c0_28], %50 {strides = array<i32>} : memref<2x8x32xf32, #tpu.memory_space<vmem>>, vector<2x1x32xf32>,
    %c0_29 = arith.constant 0 : index
    %c0_30 = arith.constant 0 : index
    %c0_31 = arith.constant 0 : index
    %51 = vector.load %arg6[%c0_29, %c0_30, %c0_31] : memref<2x8x32xf32, #tpu.memory_space<vmem>>, vector<2x8x32xf32>
    %52 = vector.shape_cast %51 : vector<2x8x32xf32> to vector<16x32xf32>
    %c0_32 = arith.constant 0 : index
    %c0_33 = arith.constant 0 : index
    %53 = vector.load %arg3[%c0_32, %c0_33] : memref<32x4xf32, #tpu.memory_space<vmem>>, vector<32x4xf32>
    %cst_34 = arith.constant dense<0.000000e+00> : vector<16x4xf32>
    %54 = tpu.matmul %52, %53, %cst_34 {dimension_numbers = #tpu.dot_dimension_numbers<[1], [0], [0], [1], [0, 0, 1, 1], [], []>} : vector<16x32xf32>, vector<32x4xf32>, vector<16x4xf32> -> vector<16x4xf32>
    %c0_35 = arith.constant 0 : index
    %c0_36 = arith.constant 0 : index
    %55 = vector.load %arg4[%c0_35, %c0_36] : memref<1x4xf32, #tpu.memory_space<vmem>>, vector<1x4xf32>
    %56 = vector.broadcast %55 : vector<1x4xf32> to vector<16x4xf32>
    %57 = arith.addf %54, %56 : vector<16x4xf32>
    %c0_37 = arith.constant 0 : index
    %c0_38 = arith.constant 0 : index
    %58 = vector.load %arg5[%c0_37, %c0_38] : memref<16x4xf32, #tpu.memory_space<vmem>>, vector<16x4xf32>
    tpu.vector_store %arg5[%c0_37, %c0_38], %57 {strides = array<i32>} : memref<16x4xf32, #tpu.memory_space<vmem>>, vector<16x4xf32>,
    return
  }
}

</mosaic_0001>

<llo_original>
// kernel: tpu_custom_call.1
$region0: #{tpu_custom_call.1}
  #allocation0 [shape = 'u32[]', space=smem, size = 0x4, offset = 0x4, fixed_abs, tag = 'smem constant byte address 0x4 - core index']
  #allocation1 [shape = 'u32[72,128]{1,0:T(1,128)}', space=vmem, size = 0x9000, scoped, tag = 'internal scratch']
  #allocation2 [shape = 'f32[2,8,32]{2,1,0:T(8,128)}', space=vmem, size = 0x2000, scoped, tag = 'scratch operand']
  %s0 = inlined_call_operand.vmem [shape: f32[2,32], index: 0, kind: input, shape index: {}]
  %s1 = inlined_call_operand.vmem [shape: f32[32,32], index: 1, kind: input, shape index: {}]
  %s2 = inlined_call_operand.vmem [shape: f32[2,32], index: 2, kind: input, shape index: {}]
  %s3 = inlined_call_operand.vmem [shape: f32[32,4], index: 3, kind: input, shape index: {}]
  %s4 = inlined_call_operand.vmem [shape: f32[1,4], index: 4, kind: input, shape index: {}]
  %s5 = inlined_call_operand.vmem [shape: f32[16,4], index: 5, kind: output, shape index: {}]
  %s6 = sld [smem:[#allocation0]]
  $region30: #{tpu_custom_call.1} parent=0
    _
  %s8 = ssub.s32 1, %s6
  %s9 = scalar_select 0, %s8, %s6
  // Predicated region
  $region2: #{tpu_custom_call.1} parent=0 // pred_check
    _
  $region3: #{tpu_custom_call.1} parent=0 // pred_check_branch
    %11 = sbr.rel (0) target = $region5
  $region4: #{tpu_custom_call.1} parent=0 // pred_region
    _
  $region5: #{tpu_custom_call.1} parent=0 // pred_fallthru
    _
  // Predicated region
  $region6: #{tpu_custom_call.1} parent=0 // pred_check
    _
  $region7: #{tpu_custom_call.1} parent=0 // pred_check_branch
    %13 = sbr.rel (0) target = $region9
  $region8: #{tpu_custom_call.1} parent=0 // pred_region
    _
  $region9: #{tpu_custom_call.1} parent=0 // pred_fallthru
    _
  // Predicated region
  $region10: #{tpu_custom_call.1} parent=0 // pred_check
    _
  $region11: #{tpu_custom_call.1} parent=0 // pred_check_branch
    %15 = sbr.rel (0) target = $region13
  $region12: #{tpu_custom_call.1} parent=0 // pred_region
    _
  $region13: #{tpu_custom_call.1} parent=0 // pred_fallthru
    _
  // Predicated region
  $region14: #{tpu_custom_call.1} parent=0 // pred_check
    _
  $region15: #{tpu_custom_call.1} parent=0 // pred_check_branch
    %17 = sbr.rel (0) target = $region17
  $region16: #{tpu_custom_call.1} parent=0 // pred_region
    _
  $region17: #{tpu_custom_call.1} parent=0 // pred_fallthru
    _
  // Predicated region
  $region18: #{tpu_custom_call.1} parent=0 // pred_check
    _
  $region19: #{tpu_custom_call.1} parent=0 // pred_check_branch
    %19 = sbr.rel (0) target = $region21
  $region20: #{tpu_custom_call.1} parent=0 // pred_region
    _
  $region21: #{tpu_custom_call.1} parent=0 // pred_fallthru
    _
  %v20 = vld [vmem:[%s1] sm:$0xff]
  %v21 = vld [vmem:[%s1 + $0x8] sm:$0xff]
  %v22 = vld [vmem:[%s1 + $0x10] sm:$0xff]
  %v23 = vld [vmem:[%s1 + $0x18] sm:$0xff]
  %v24 = vld [vmem:[%s2] sm:$0x3]
  %v25 = vld [vmem:[%s0] sm:$0x3]
  %vm26 = vcmask 261120
  %v28 = vsel %vm26, %v25, 0
  %30 = vmatpush.msra.mxu0 0.0
  %31 = vmatpush.msra.mxu0 0.0
  %32 = vmatpush.msra.mxu0 0.0
  %33 = vmatpush.msra.mxu0 0.0
  %34 = vmatpush.msra.mxu0 0.0
  %35 = vmatpush.msra.mxu0 0.0
  %36 = vmatpush.msra.mxu0 0.0
  %37 = vmatpush.msra.mxu0 0.0
  %38 = vmatpush.msra.mxu0 0.0
  %39 = vmatpush.msra.mxu0 0.0
  %40 = vmatpush.msra.mxu0 0.0
  %41 = vmatpush.msra.mxu0 0.0
  %42 = vmatpush.msra.mxu0 %v23
  %43 = vmatpush.msra.mxu0 %v22
  %44 = vmatpush.msra.mxu0 %v21
  %45 = vmatpush.msra.mxu0 %v20
  %46 = vmatmul.f32.gmra.mxu0 %v28
  %v47 = vpop.f32.mrf.mxu0
  %v48 = vadd.f32 %v24, %v47
  %49 = vdwg.mxu0
  %v50 = vtanh.pop %v48
  %v52 = vrot.slane %v50, 1
  %vm54 = vcmask 253952
  %55 = vst.msk [vmem:[#allocation2] sm:$0x1] %vm54, %v50
  %56 = vst.msk [vmem:[#allocation2 + $0x8] sm:$0x1] %vm54, %v52
  %v57 = vsel %vm26, %v50, 0
  %59 = vmatpush.msra.mxu0 0.0
  %60 = vmatpush.msra.mxu0 0.0
  %61 = vmatpush.msra.mxu0 0.0
  %62 = vmatpush.msra.mxu0 0.0
  %63 = vmatpush.msra.mxu0 0.0
  %64 = vmatpush.msra.mxu0 0.0
  %65 = vmatpush.msra.mxu0 0.0
  %66 = vmatpush.msra.mxu0 0.0
  %67 = vmatpush.msra.mxu0 0.0
  %68 = vmatpush.msra.mxu0 0.0
  %69 = vmatpush.msra.mxu0 0.0
  %70 = vmatpush.msra.mxu0 0.0
  %71 = vmatpush.msra.mxu0 %v23
  %72 = vmatpush.msra.mxu0 %v22
  %73 = vmatpush.msra.mxu0 %v21
  %74 = vmatpush.msra.mxu0 %v20
  %75 = vmatmul.f32.gmra.mxu0 %v57
  %v76 = vpop.f32.mrf.mxu0
  %v77 = vadd.f32 %v24, %v76
  %78 = vdwg.mxu0
  %v79 = vtanh.pop %v77
  %v81 = vrot.slane %v79, 1
  %83 = vst.msk [vmem:[#allocation2 + $0x1] sm:$0x1] %vm54, %v79
  %84 = vst.msk [vmem:[#allocation2 + $0x9] sm:$0x1] %vm54, %v81
  %v85 = vsel %vm26, %v79, 0
  %87 = vmatpush.msra.mxu0 0.0
  %88 = vmatpush.msra.mxu0 0.0
  %89 = vmatpush.msra.mxu0 0.0
  %90 = vmatpush.msra.mxu0 0.0
  %91 = vmatpush.msra.mxu0 0.0
  %92 = vmatpush.msra.mxu0 0.0
  %93 = vmatpush.msra.mxu0 0.0
  %94 = vmatpush.msra.mxu0 0.0
  %95 = vmatpush.msra.mxu0 0.0
  %96 = vmatpush.msra.mxu0 0.0
  %97 = vmatpush.msra.mxu0 0.0
  %98 = vmatpush.msra.mxu0 0.0
  %99 = vmatpush.msra.mxu0 %v23
  %100 = vmatpush.msra.mxu0 %v22
  %101 = vmatpush.msra.mxu0 %v21
  %102 = vmatpush.msra.mxu0 %v20
  %103 = vmatmul.f32.gmra.mxu0 %v85
  %v104 = vpop.f32.mrf.mxu0
  %v105 = vadd.f32 %v24, %v104
  %106 = vdwg.mxu0
  %v107 = vtanh.pop %v105
  %v109 = vrot.slane %v107, 1
  %111 = vst.msk [vmem:[#allocation2 + $0x2] sm:$0x1] %vm54, %v107
  %112 = vst.msk [vmem:[#allocation2 + $0xa] sm:$0x1] %vm54, %v109
  %v113 = vsel %vm26, %v107, 0
  %115 = vmatpush.msra.mxu0 0.0
  %116 = vmatpush.msra.mxu0 0.0
  %117 = vmatpush.msra.mxu0 0.0
  %118 = vmatpush.msra.mxu0 0.0
  %119 = vmatpush.msra.mxu0 0.0
  %120 = vmatpush.msra.mxu0 0.0
  %121 = vmatpush.msra.mxu0 0.0
  %122 = vmatpush.msra.mxu0 0.0
  %123 = vmatpush.msra.mxu0 0.0
  %124 = vmatpush.msra.mxu0 0.0
  %125 = vmatpush.msra.mxu0 0.0
  %126 = vmatpush.msra.mxu0 0.0
  %127 = vmatpush.msra.mxu0 %v23
  %128 = vmatpush.msra.mxu0 %v22
  %129 = vmatpush.msra.mxu0 %v21
  %130 = vmatpush.msra.mxu0 %v20
  %131 = vmatmul.f32.gmra.mxu0 %v113
  %v132 = vpop.f32.mrf.mxu0
  %v133 = vadd.f32 %v24, %v132
  %134 = vdwg.mxu0
  %v135 = vtanh.pop %v133
  %v137 = vrot.slane %v135, 1
  %139 = vst.msk [vmem:[#allocation2 + $0x3] sm:$0x1] %vm54, %v135
  %140 = vst.msk [vmem:[#allocation2 + $0xb] sm:$0x1] %vm54, %v137
  %v141 = vsel %vm26, %v135, 0
  %143 = vmatpush.msra.mxu0 0.0
  %144 = vmatpush.msra.mxu0 0.0
  %145 = vmatpush.msra.mxu0 0.0
  %146 = vmatpush.msra.mxu0 0.0
  %147 = vmatpush.msra.mxu0 0.0
  %148 = vmatpush.msra.mxu0 0.0
  %149 = vmatpush.msra.mxu0 0.0
  %150 = vmatpush.msra.mxu0 0.0
  %151 = vmatpush.msra.mxu0 0.0
  %152 = vmatpush.msra.mxu0 0.0
  %153 = vmatpush.msra.mxu0 0.0
  %154 = vmatpush.msra.mxu0 0.0
  %155 = vmatpush.msra.mxu0 %v23
  %156 = vmatpush.msra.mxu0 %v22
  %157 = vmatpush.msra.mxu0 %v21
  %158 = vmatpush.msra.mxu0 %v20
  %159 = vmatmul.f32.gmra.mxu0 %v141
  %v160 = vpop.f32.mrf.mxu0
  %v161 = vadd.f32 %v24, %v160
  %162 = vdwg.mxu0
  %v163 = vtanh.pop %v161
  %v165 = vrot.slane %v163, 1
  %167 = vst.msk [vmem:[#allocation2 + $0x4] sm:$0x1] %vm54, %v163
  %168 = vst.msk [vmem:[#allocation2 + $0xc] sm:$0x1] %vm54, %v165
  %v169 = vsel %vm26, %v163, 0
  %171 = vmatpush.msra.mxu0 0.0
  %172 = vmatpush.msra.mxu0 0.0
  %173 = vmatpush.msra.mxu0 0.0
  %174 = vmatpush.msra.mxu0 0.0
  %175 = vmatpush.msra.mxu0 0.0
  %176 = vmatpush.msra.mxu0 0.0
  %177 = vmatpush.msra.mxu0 0.0
  %178 = vmatpush.msra.mxu0 0.0
  %179 = vmatpush.msra.mxu0 0.0
  %180 = vmatpush.msra.mxu0 0.0
  %181 = vmatpush.msra.mxu0 0.0
  %182 = vmatpush.msra.mxu0 0.0
  %183 = vmatpush.msra.mxu0 %v23
  %184 = vmatpush.msra.mxu0 %v22
  %185 = vmatpush.msra.mxu0 %v21
  %186 = vmatpush.msra.mxu0 %v20
  %187 = vmatmul.f32.gmra.mxu0 %v169
  %v188 = vpop.f32.mrf.mxu0
  %v189 = vadd.f32 %v24, %v188
  %190 = vdwg.mxu0
  %v191 = vtanh.pop %v189
  %v193 = vrot.slane %v191, 1
  %195 = vst.msk [vmem:[#allocation2 + $0x5] sm:$0x1] %vm54, %v191
  %196 = vst.msk [vmem:[#allocation2 + $0xd] sm:$0x1] %vm54, %v193
  %v197 = vsel %vm26, %v191, 0
  %199 = vmatpush.msra.mxu0 0.0
  %200 = vmatpush.msra.mxu0 0.0
  %201 = vmatpush.msra.mxu0 0.0
  %202 = vmatpush.msra.mxu0 0.0
  %203 = vmatpush.msra.mxu0 0.0
  %204 = vmatpush.msra.mxu0 0.0
  %205 = vmatpush.msra.mxu0 0.0
  %206 = vmatpush.msra.mxu0 0.0
  %207 = vmatpush.msra.mxu0 0.0
  %208 = vmatpush.msra.mxu0 0.0
  %209 = vmatpush.msra.mxu0 0.0
  %210 = vmatpush.msra.mxu0 0.0
  %211 = vmatpush.msra.mxu0 %v23
  %212 = vmatpush.msra.mxu0 %v22
  %213 = vmatpush.msra.mxu0 %v21
  %214 = vmatpush.msra.mxu0 %v20
  %215 = vmatmul.f32.gmra.mxu0 %v197
  %v216 = vpop.f32.mrf.mxu0
  %v217 = vadd.f32 %v24, %v216
  %218 = vdwg.mxu0
  %v219 = vtanh.pop %v217
  %v221 = vrot.slane %v219, 1
  %223 = vst.msk [vmem:[#allocation2 + $0x6] sm:$0x1] %vm54, %v219
  %224 = vst.msk [vmem:[#allocation2 + $0xe] sm:$0x1] %vm54, %v221
  %v225 = vsel %vm26, %v219, 0
  %227 = vmatpush.msra.mxu0 0.0
  %228 = vmatpush.msra.mxu0 0.0
  %229 = vmatpush.msra.mxu0 0.0
  %230 = vmatpush.msra.mxu0 0.0
  %231 = vmatpush.msra.mxu0 0.0
  %232 = vmatpush.msra.mxu0 0.0
  %233 = vmatpush.msra.mxu0 0.0
  %234 = vmatpush.msra.mxu0 0.0
  %235 = vmatpush.msra.mxu0 0.0
  %236 = vmatpush.msra.mxu0 0.0
  %237 = vmatpush.msra.mxu0 0.0
  %238 = vmatpush.msra.mxu0 0.0
  %239 = vmatpush.msra.mxu0 %v23
  %240 = vmatpush.msra.mxu0 %v22
  %241 = vmatpush.msra.mxu0 %v21
  %242 = vmatpush.msra.mxu0 %v20
  %243 = vmatmul.f32.gmra.mxu0 %v225
  %v244 = vpop.f32.mrf.mxu0
  %v245 = vadd.f32 %v24, %v244
  %246 = vdwg.mxu0
  %v247 = vtanh.pop %v245
  %v249 = vrot.slane %v247, 1
  %251 = vst.msk [vmem:[#allocation2 + $0x7] sm:$0x1] %vm54, %v247
  %252 = vst.msk [vmem:[#allocation2 + $0xf] sm:$0x1] %vm54, %v249
  %v253 = vld [vmem:[#allocation2] sm:$0xff]
  %v254 = vld [vmem:[#allocation2 + $0x8] sm:$0xff]
  %v255 = vld [vmem:[%s3] sm:$0xff]
  %v256 = vld [vmem:[%s3 + $0x8] sm:$0xff]
  %v257 = vld [vmem:[%s3 + $0x10] sm:$0xff]
  %v258 = vld [vmem:[%s3 + $0x18] sm:$0xff]
  %v259 = vld [vmem:[%s4] sm:$0x1]
  %v261 = vperm.slane %v259, 0
  %v264 = vsel %vm26, %v253, 0
  %v267 = vsel %vm26, %v254, 0
  %269 = vmatpush.msra.mxu0 0.0
  %270 = vmatpush.msra.mxu0 0.0
  %271 = vmatpush.msra.mxu0 0.0
  %272 = vmatpush.msra.mxu0 0.0
  %273 = vmatpush.msra.mxu0 0.0
  %274 = vmatpush.msra.mxu0 0.0
  %275 = vmatpush.msra.mxu0 0.0
  %276 = vmatpush.msra.mxu0 0.0
  %277 = vmatpush.msra.mxu0 0.0
  %278 = vmatpush.msra.mxu0 0.0
  %279 = vmatpush.msra.mxu0 0.0
  %280 = vmatpush.msra.mxu0 0.0
  %281 = vmatpush.msra.mxu0 %v258
  %282 = vmatpush.msra.mxu0 %v257
  %283 = vmatpush.msra.mxu0 %v256
  %284 = vmatpush.msra.mxu0 %v255
  %285 = vmatmul.f32.gmra.mxu0 %v264
  %v286 = vpop.f32.mrf.mxu0
  %v287 = vadd.f32 %v261, %v286
  %288 = vmatmul.f32.gmra.mxu0 %v267
  %v289 = vpop.f32.mrf.mxu0
  %v290 = vadd.f32 %v261, %v289
  %291 = vdwg.mxu0
  %vm292 = vcmask 31744
  %293 = vst.msk [vmem:[%s5] sm:$0xff] %vm292, %v287
  %294 = vst.msk [vmem:[%s5 + $0x8] sm:$0xff] %vm292, %v290
  // Predicated region
  $region22: #{tpu_custom_call.1} parent=0 // pred_check
    _
  $region23: #{tpu_custom_call.1} parent=0 // pred_check_branch
    %296 = sbr.rel (0) target = $region25
  $region24: #{tpu_custom_call.1} parent=0 // pred_region
    _
  $region25: #{tpu_custom_call.1} parent=0 // pred_fallthru
    _
  // Predicated region
  $region26: #{tpu_custom_call.1} parent=0 // pred_check
    _
  $region27: #{tpu_custom_call.1} parent=0 // pred_check_branch
    %298 = sbr.rel (0) target = $region29
  $region28: #{tpu_custom_call.1} parent=0 // pred_region
    _
  $region29: #{tpu_custom_call.1} parent=0 // pred_fallthru
    _

</llo_original>
